<compile_context>
chip_gen: v7x
topology: tpu7x:2x2x1
jax: 0.10.0
libtpu: 0.0.40
codegen_flags: <defaults>
</compile_context>

<pallas_src>
import numpy as np

import jax
import jax.numpy as jnp
from jax.experimental import pallas as pl
from jax.experimental.pallas import tpu as pltpu


# ------------------------------------------------------------------
# Precompute (plain numpy) — mirrors the PyTorch module's __init__
# ------------------------------------------------------------------
def gen_knot_vector(p, n):
    m = p + n + 1
    num_segments = m - 2 * (p + 1) + 1
    knot_vector = [0.0] * p
    knot_vector += list(np.linspace(0.0, 1.0, num_segments + 1))
    knot_vector += [1.0] * p
    return np.asarray(knot_vector, dtype=np.float64)


def pre_compute_basis(u, U, m, p):
    """FindSpan (A2.1) + BasisFuns (A2.2) from The NURBS Book."""
    out_dim = u.shape[0]
    n = m - 1
    uspan = np.zeros((out_dim,), dtype=np.int32)
    Nu = np.zeros((out_dim, p + 1), dtype=np.float64)
    for k in range(out_dim):
        uk = float(u[k])
        if uk >= U[n + 1]:
            span = n
        else:
            span = int(np.searchsorted(U, uk, side="right") - 1)
            span = min(max(span, p), n)
        uspan[k] = span
        N = np.zeros(p + 1)
        left = np.zeros(p + 1)
        right = np.zeros(p + 1)
        N[0] = 1.0
        for j in range(1, p + 1):
            left[j] = uk - U[span + 1 - j]
            right[j] = U[span + j] - uk
            saved = 0.0
            for r in range(j):
                temp = N[r] / (right[r + 1] + left[j - r])
                N[r] = saved + right[r + 1] * temp
                saved = left[j - r] * temp
            N[j] = saved
        Nu[k] = N
    return uspan, Nu


def build_dense_basis(uspan, Nu, m, p):
    """Scatter the (out_dim, p+1) local basis into a dense (out_dim, m) matrix."""
    out_dim = uspan.shape[0]
    A = np.zeros((out_dim, m), dtype=np.float64)
    for k in range(out_dim):
        for l in range(p + 1):
            A[k, uspan[k] - p + l] = Nu[k, l]
    return A


def build_kron_basis(basis, dim):
    """Block-structured weights that consume ctrl_pts in native (B, m*(dim+1))
    order and produce a k-major, lane-dense (out_dim*dim)-wide result.

      W_xyz[mi*(dim+1)+d,   k*dim+d] = basis[k, mi]   (numerator,   d < dim)
      W_den[mi*(dim+1)+dim, k*dim+d] = basis[k, mi]   (denominator, replicated per d)
    """
    out_dim, m = basis.shape
    dp1 = dim + 1
    W_xyz = np.zeros((m * dp1, out_dim * dim), dtype=np.float32)
    W_den = np.zeros((m * dp1, out_dim * dim), dtype=np.float32)
    for mi in range(m):
        for k in range(out_dim):
            for d in range(dim):
                W_xyz[mi * dp1 + d, k * dim + d] = basis[k, mi]
                W_den[mi * dp1 + dim, k * dim + d] = basis[k, mi]
    return W_xyz, W_den


# ------------------------------------------------------------------
# Pallas kernel
#   w_xyz_ref / w_den_ref : (m*(dim+1), out_dim*dim)  -- VMEM-resident
#   x_ref                 : (TB, m*(dim+1))           -- native ctrl_pts layout
#   out_ref               : (TB, out_dim*dim)         -- lane-dense, k-major
# ------------------------------------------------------------------
def _curve_eval_kernel(w_xyz_ref, w_den_ref, x_ref, out_ref):
    x = x_ref[...]
    num = jnp.dot(x, w_xyz_ref[...], preferred_element_type=jnp.float32)
    den = jnp.dot(x, w_den_ref[...], preferred_element_type=jnp.float32)
    out_ref[...] = num / den


def _round_up(x, k):
    return ((x + k - 1) // k) * k


def curve_eval_pallas(ctrl_pts, w_xyz, w_den, dim, *, batch_tile=4096):
    B, m, dp1 = ctrl_pts.shape
    md = m * dp1
    n_lanes = w_xyz.shape[1]            # out_dim * dim
    out_dim = n_lanes // dim

    # Contiguous (free) reshape — no wrapper transpose; the kron'd basis
    # consumes the native layout directly.
    x = ctrl_pts.astype(jnp.float32).reshape(B, md)

    # Batch tiling: TB a multiple of 8 (sublane constraint), Bp a multiple of
    # TB, and >=2 grid steps when the batch allows it (feeds both v7x TCs).
    Br = _round_up(B, 8)
    TB = min(batch_tile, max(8, _round_up(pl.cdiv(Br, 2), 8)))
    TB = min(TB, Br)
    Bp = _round_up(Br, TB)
    if Bp != B:
        # Padding rows use 1.0 so the denominator stays finite; sliced off below.
        x = jnp.pad(x, ((0, Bp - B), (0, 0)), constant_values=1.0)

    out = pl.pallas_call(
        _curve_eval_kernel,
        out_shape=jax.ShapeDtypeStruct((Bp, n_lanes), jnp.float32),
        grid=(Bp // TB,),
        in_specs=[
            pl.BlockSpec((md, n_lanes), lambda b: (0, 0)),   # basis: fetched once
            pl.BlockSpec((md, n_lanes), lambda b: (0, 0)),
            pl.BlockSpec((TB, md), lambda b: (b, 0)),        # one batch tile
        ],
        out_specs=pl.BlockSpec((TB, n_lanes), lambda b: (b, 0)),
        compiler_params=pltpu.CompilerParams(
            dimension_semantics=("parallel",)),
    )(w_xyz, w_den, x)

    # k-major lanes -> (B, out_dim, dim) is a contiguous reshape (no transpose).
    return out[:B].reshape(B, out_dim, dim)


# ------------------------------------------------------------------
# Module-equivalent wrapper (forward pass only)
# ------------------------------------------------------------------
class CurveEval:
    # TODO(synk): backward pass (custom autograd Function) is not implemented;
    # only the forward evaluation is provided here.
    def __init__(self, m, dimension=3, p=2, out_dim=32):
        self.m = m
        self._dimension = dimension
        self.p = p
        self.out_dim = out_dim
        self.U = gen_knot_vector(p, m)
        self.u = np.linspace(0.0, 0.9999, out_dim)
        uspan, Nu = pre_compute_basis(self.u, self.U, m, p)
        self.basis = build_dense_basis(uspan, Nu, m, p).astype(np.float32)  # (out_dim, m)
        w_xyz, w_den = build_kron_basis(self.basis, dimension)
        self.w_xyz = jnp.asarray(w_xyz)    # (m*(dim+1), out_dim*dim)
        self.w_den = jnp.asarray(w_den)    # (m*(dim+1), out_dim*dim)

    def __call__(self, ctrl_pts):
        # ctrl_pts: (batch, m, dimension+1) -> (batch, out_dim, dimension)
        return curve_eval_pallas(ctrl_pts, self.w_xyz, self.w_den, self._dimension)

    # pure-numpy reference for validation
    def reference(self, ctrl_pts):
        A = self.basis                                        # (out_dim, m)
        cw = np.einsum("km,bmd->bkd", A, np.asarray(ctrl_pts, dtype=np.float32))
        d = self._dimension
        return cw[:, :, :d] / cw[:, :, d:d + 1]


# ------------------------------------------------------------------
if __name__ == "__main__":
    batch, m, dimension, p, out_dim = 2, 8, 3, 2, 32

    key = jax.random.PRNGKey(0)
    k_xyz, k_w = jax.random.split(key)
    coords = jax.random.normal(k_xyz, (batch, m, dimension), dtype=jnp.float32)
    weights = 1.0 + 0.5 * jax.random.uniform(k_w, (batch, m, 1), dtype=jnp.float32)
    ctrl_pts = jnp.concatenate([coords, weights], axis=-1)   # (batch, m, dimension+1)

    layer = CurveEval(m, dimension=dimension, p=p, out_dim=out_dim)

    out = layer(ctrl_pts)
    out = jax.block_until_ready(out)

    ref = layer.reference(ctrl_pts)
    assert out.shape == (batch, out_dim, dimension)
    np.testing.assert_allclose(np.asarray(out), ref, rtol=1e-5, atol=1e-5)

    print("KERNEL_OK")
</pallas_src>

<mosaic_0001>
module attributes {stable_mosaic.version = 11 : i64} {
  func.func @_curve_eval_kernel(%arg0: i32, %arg1: memref<32x96xf32, #tpu.memory_space<vmem>>, %arg2: memref<32x96xf32, #tpu.memory_space<vmem>>, %arg3: memref<8x32xf32, #tpu.memory_space<vmem>>, %arg4: memref<8x96xf32, #tpu.memory_space<vmem>>) attributes {dimension_semantics = [#tpu.dimension_semantics<parallel>], iteration_bounds = array<i64: 1>, scalar_prefetch = 0 : i64, scratch_operands = 0 : i64, tpu.core_type = #tpu.core_type<tc>, window_params = [{pipeline_mode = #tpu.pipeline_mode<synchronous>, transform_indices = @transform_0, window_bounds = array<i64: 32, 96>}, {pipeline_mode = #tpu.pipeline_mode<synchronous>, transform_indices = @transform_1, window_bounds = array<i64: 32, 96>}, {transform_indices = @transform_2, window_bounds = array<i64: 8, 32>}, {transform_indices = @transform_3, window_bounds = array<i64: 8, 96>}]} {
    %c0 = arith.constant 0 : index
    %c0_0 = arith.constant 0 : index
    %0 = vector.load %arg3[%c0, %c0_0] : memref<8x32xf32, #tpu.memory_space<vmem>>, vector<8x32xf32>
    %c0_1 = arith.constant 0 : index
    %c0_2 = arith.constant 0 : index
    %1 = vector.load %arg1[%c0_1, %c0_2] : memref<32x96xf32, #tpu.memory_space<vmem>>, vector<32x96xf32>
    %cst = arith.constant dense<0.000000e+00> : vector<8x96xf32>
    %2 = tpu.matmul %0, %1, %cst {dimension_numbers = #tpu.dot_dimension_numbers<[1], [0], [0], [1], [0, 0, 1, 1], [], []>} : vector<8x32xf32>, vector<32x96xf32>, vector<8x96xf32> -> vector<8x96xf32>
    %c0_3 = arith.constant 0 : index
    %c0_4 = arith.constant 0 : index
    %3 = vector.load %arg2[%c0_3, %c0_4] : memref<32x96xf32, #tpu.memory_space<vmem>>, vector<32x96xf32>
    %cst_5 = arith.constant dense<0.000000e+00> : vector<8x96xf32>
    %4 = tpu.matmul %0, %3, %cst_5 {dimension_numbers = #tpu.dot_dimension_numbers<[1], [0], [0], [1], [0, 0, 1, 1], [], []>} : vector<8x32xf32>, vector<32x96xf32>, vector<8x96xf32> -> vector<8x96xf32>
    %5 = arith.divf %2, %4 : vector<8x96xf32>
    %c0_6 = arith.constant 0 : index
    %c0_7 = arith.constant 0 : index
    %6 = vector.load %arg4[%c0_6, %c0_7] : memref<8x96xf32, #tpu.memory_space<vmem>>, vector<8x96xf32>
    tpu.vector_store %arg4[%c0_6, %c0_7], %5 {strides = array<i32>} : memref<8x96xf32, #tpu.memory_space<vmem>>, vector<8x96xf32>,
    return
  }
  func.func @transform_0(%arg0: i32) -> (i32, i32) {
    %c0_i32 = arith.constant 0 : i32
    %c0_i32_0 = arith.constant 0 : i32
    %c0_i32_1 = arith.constant 0 : i32
    return %c0_i32, %c0_i32_0 : i32, i32
  }
  func.func @transform_1(%arg0: i32) -> (i32, i32) {
    %c0_i32 = arith.constant 0 : i32
    %c0_i32_0 = arith.constant 0 : i32
    %c0_i32_1 = arith.constant 0 : i32
    return %c0_i32, %c0_i32_0 : i32, i32
  }
  func.func @transform_2(%arg0: i32) -> (i32, i32) {
    %c0_i32 = arith.constant 0 : i32
    %c0_i32_0 = arith.constant 0 : i32
    return %arg0, %c0_i32 : i32, i32
  }
  func.func @transform_3(%arg0: i32) -> (i32, i32) {
    %c0_i32 = arith.constant 0 : i32
    %c0_i32_0 = arith.constant 0 : i32
    return %arg0, %c0_i32 : i32, i32
  }
}

</mosaic_0001>

<llo_original>
// kernel: tpu_custom_call.1
$region0: #{tpu_custom_call.1}
  #allocation0 [shape = 'u32[]', space=smem, size = 0x4, offset = 0x4, fixed_abs, tag = 'smem constant byte address 0x4 - core index']
  #allocation1 [shape = 'u32[144,128]{1,0:T(1,128)}', space=vmem, size = 0x12000, scoped, tag = 'internal scratch']
  %s0 = inlined_call_operand.hbm [shape: f32[32,96], index: 0, kind: input, shape index: {}]
  %s1 = inlined_call_operand.hbm [shape: f32[32,96], index: 1, kind: input, shape index: {}]
  %s2 = inlined_call_operand.hbm [shape: f32[8,32], index: 2, kind: input, shape index: {}]
  %s3 = inlined_call_operand.hbm [shape: f32[8,96], index: 3, kind: output, shape index: {}]
  %s4 = sld [smem:[#allocation0]]
  $region34: #{tpu_custom_call.1} parent=0
    _
  %s6 = ssub.s32 1, %s4
  %s7 = scalar_select 0, %s6, %s4
  $region1: #{tpu_custom_call.1} parent=0
    #allocation2 [shape = 'u8[16384]{0}', space=vmem, size = 0x4000, scoped, tag = 'input window, operand 0, single buffered']
    #allocation3 [shape = 's32[1]{0}', space=sflag, size = 0x4, scoped, tag = 'scoped memory for tpu_custom_call.1']
    #allocation4 [shape = 's32[1]{0}', space=sflag, size = 0x4, scoped, tag = 'scoped memory for tpu_custom_call.1']
    #allocation5 [shape = 'u8[16384]{0}', space=vmem, size = 0x4000, scoped, tag = 'input window, operand 1, single buffered']
    #allocation6 [shape = 's32[1]{0}', space=sflag, size = 0x4, scoped, tag = 'scoped memory for tpu_custom_call.1']
    #allocation7 [shape = 'u8[4096]{0}', space=vmem, size = 0x1000, scoped, tag = 'input window, operand 2, single buffered']
    #allocation8 [shape = 'u8[4096]{0}', space=vmem, size = 0x1000, scoped, tag = 'output window, operand 0, single buffered']
    %8 = vsyncpa [#allocation3], 0
    %9 = vsyncpa [#allocation6], 0
    %10 = vsyncpa [#allocation4], 0
    // Predicated region
    $region2: #{tpu_custom_call.1} parent=1 // pred_check
      _
    $region3: #{tpu_custom_call.1} parent=1 // pred_check_branch
      %12 = sbr.rel (0) target = $region5
    $region4: #{tpu_custom_call.1} parent=1 // pred_region
      %s14 = ssub.s32 512, 512
      %15 = vsyncadd [#allocation3], %s14
      %s16 = sshll.u32 [#allocation2], 4
      %s17 = int_to_ptr.vmem [resolvable:$true] %s16
      %22 = dma.hbm_to_vmem [thread:$0]  %s0, 512, %s17, [#allocation3], 128, 128, 8
    $region5: #{tpu_custom_call.1} parent=1 // pred_fallthru
      _
    // Predicated region
    $region6: #{tpu_custom_call.1} parent=1 // pred_check
      _
    $region7: #{tpu_custom_call.1} parent=1 // pred_check_branch
      %24 = sbr.rel (0) target = $region9
    $region8: #{tpu_custom_call.1} parent=1 // pred_region
      %s26 = ssub.s32 512, 512
      %27 = vsyncadd [#allocation6], %s26
      %s28 = sshll.u32 [#allocation5], 4
      %s29 = int_to_ptr.vmem [resolvable:$true] %s28
      %34 = dma.hbm_to_vmem [thread:$0]  %s1, 512, %s29, [#allocation6], 128, 128, 8
    $region9: #{tpu_custom_call.1} parent=1 // pred_fallthru
      _
    // Predicated region
    $region10: #{tpu_custom_call.1} parent=1 // pred_check
      _
    $region11: #{tpu_custom_call.1} parent=1 // pred_check_branch
      %36 = sbr.rel (0) target = $region13
    $region12: #{tpu_custom_call.1} parent=1 // pred_region
      %s38 = ssub.s32 128, 128
      %39 = vsyncadd [#allocation6], %s38
      %s41 = sshll.u32 [#allocation7], 4
      %s42 = int_to_ptr.vmem [resolvable:$true] %s41
      %44 = dma.hbm_to_vmem [thread:$0]  %s2, 128, %s42, [#allocation6]
    $region13: #{tpu_custom_call.1} parent=1 // pred_fallthru
      _
    // Predicated region
    $region14: #{tpu_custom_call.1} parent=1 // pred_check
      _
    $region15: #{tpu_custom_call.1} parent=1 // pred_check_branch
      %46 = sbr.rel (0) target = $region17
    $region16: #{tpu_custom_call.1} parent=1 // pred_region
      %47 = dma.done [#allocation3], 512
    $region17: #{tpu_custom_call.1} parent=1 // pred_fallthru
      _
    // Predicated region
    $region18: #{tpu_custom_call.1} parent=1 // pred_check
      _
    $region19: #{tpu_custom_call.1} parent=1 // pred_check_branch
      %49 = sbr.rel (0) target = $region21
    $region20: #{tpu_custom_call.1} parent=1 // pred_region
      %50 = dma.done [#allocation6], 512
    $region21: #{tpu_custom_call.1} parent=1 // pred_fallthru
      _
    // Predicated region
    $region22: #{tpu_custom_call.1} parent=1 // pred_check
      _
    $region23: #{tpu_custom_call.1} parent=1 // pred_check_branch
      %52 = sbr.rel (0) target = $region25
    $region24: #{tpu_custom_call.1} parent=1 // pred_region
      %53 = dma.done [#allocation6], 128
    $region25: #{tpu_custom_call.1} parent=1 // pred_fallthru
      _
    %v54 = vld [vmem:[#allocation7] sm:$0xff]
    %v55 = vld [vmem:[#allocation2] sm:$0xff]
    %v56 = vld [vmem:[#allocation2 + $0x8] sm:$0xff]
    %v57 = vld [vmem:[#allocation2 + $0x10] sm:$0xff]
    %v58 = vld [vmem:[#allocation2 + $0x18] sm:$0xff]
    %vm59 = vcmask 261120
    %v61 = vsel %vm59, %v54, 0
    %63 = vmatprep.subr.mxu0 0.0
    %64 = vmatpush1.msra.mxu0 %v55
    %65 = vmatprep.subr.mxu0 0.0
    %66 = vmatpush1.msra.mxu0 %v56
    %67 = vmatprep.subr.mxu0 0.0
    %68 = vmatpush1.msra.mxu0 %v57
    %69 = vmatprep.subr.mxu0 0.0
    %70 = vmatpush1.msra.mxu0 %v58
    %71 = vmatprep.subr.mxu0 0.0
    %72 = vmatpush1.msra.mxu0 0.0
    %73 = vmatprep.subr.mxu0 0.0
    %74 = vmatpush1.msra.mxu0 0.0
    %75 = vmatprep.subr.mxu0 0.0
    %76 = vmatpush1.msra.mxu0 0.0
    %77 = vmatprep.subr.mxu0 0.0
    %78 = vmatpush1.msra.mxu0 0.0
    %79 = vmatprep.subr.mxu0 0.0
    %80 = vmatpush1.msra.mxu0 0.0
    %81 = vmatprep.subr.mxu0 0.0
    %82 = vmatpush1.msra.mxu0 0.0
    %83 = vmatprep.subr.mxu0 0.0
    %84 = vmatpush1.msra.mxu0 0.0
    %85 = vmatprep.subr.mxu0 0.0
    %86 = vmatpush1.msra.mxu0 0.0
    %87 = vmatprep.subr.mxu0 0.0
    %88 = vmatpush1.msra.mxu0 0.0
    %89 = vmatprep.subr.mxu0 0.0
    %90 = vmatpush1.msra.mxu0 0.0
    %91 = vmatprep.subr.mxu0 0.0
    %92 = vmatpush1.msra.mxu0 0.0
    %93 = vmatprep.subr.mxu0 0.0
    %94 = vmatpush1.msra.mxu0 0.0
    %95 = vmatprep.subr.mxu0 0.0
    %96 = vmatpush1.msra.mxu0 0.0
    %97 = vmatprep.subr.mxu0 0.0
    %98 = vmatpush1.msra.mxu0 0.0
    %99 = vmatprep.subr.mxu0 0.0
    %100 = vmatpush1.msra.mxu0 0.0
    %101 = vmatprep.subr.mxu0 0.0
    %102 = vmatpush1.msra.mxu0 0.0
    %103 = vmatprep.subr.mxu0 0.0
    %104 = vmatpush1.msra.mxu0 0.0
    %105 = vmatprep.subr.mxu0 0.0
    %106 = vmatpush1.msra.mxu0 0.0
    %107 = vmatprep.subr.mxu0 0.0
    %108 = vmatpush1.msra.mxu0 0.0
    %109 = vmatprep.subr.mxu0 0.0
    %110 = vmatpush1.msra.mxu0 0.0
    %111 = vmatprep.subr.mxu0 0.0
    %112 = vmatpush1.msra.mxu0 0.0
    %113 = vmatprep.subr.mxu0 0.0
    %114 = vmatpush1.msra.mxu0 0.0
    %115 = vmatprep.subr.mxu0 0.0
    %116 = vmatpush1.msra.mxu0 0.0
    %117 = vmatprep.subr.mxu0 0.0
    %118 = vmatpush1.msra.mxu0 0.0
    %119 = vmatprep.subr.mxu0 0.0
    %120 = vmatpush1.msra.mxu0 0.0
    %121 = vmatprep.subr.mxu0 0.0
    %122 = vmatpush1.msra.mxu0 0.0
    %123 = vmatprep.subr.mxu0 0.0
    %124 = vmatpush1.msra.mxu0 0.0
    %125 = vmatprep.subr.mxu0 0.0
    %126 = vmatpush1.msra.mxu0 0.0
    %127 = vmatprep.mubr.f32.mxu0 0.0
    %128 = vmatmul.mubr.f32.gmra.mrb[0].mxu0 %v61
    %v129 = vpop.f32.mrb[0].mxu0
    %v130 = vadd.f32 0.0, %v129
    %v131 = vpop.f32.mrb[0].mxu0
    %132 = vdwg.mxu0
    %v133 = vld [vmem:[#allocation5] sm:$0xff]
    %v134 = vld [vmem:[#allocation5 + $0x8] sm:$0xff]
    %v135 = vld [vmem:[#allocation5 + $0x10] sm:$0xff]
    %v136 = vld [vmem:[#allocation5 + $0x18] sm:$0xff]
    %137 = vmatprep.subr.mxu0 0.0
    %138 = vmatpush1.msra.mxu0 %v133
    %139 = vmatprep.subr.mxu0 0.0
    %140 = vmatpush1.msra.mxu0 %v134
    %141 = vmatprep.subr.mxu0 0.0
    %142 = vmatpush1.msra.mxu0 %v135
    %143 = vmatprep.subr.mxu0 0.0
    %144 = vmatpush1.msra.mxu0 %v136
    %145 = vmatprep.subr.mxu0 0.0
    %146 = vmatpush1.msra.mxu0 0.0
    %147 = vmatprep.subr.mxu0 0.0
    %148 = vmatpush1.msra.mxu0 0.0
    %149 = vmatprep.subr.mxu0 0.0
    %150 = vmatpush1.msra.mxu0 0.0
    %151 = vmatprep.subr.mxu0 0.0
    %152 = vmatpush1.msra.mxu0 0.0
    %153 = vmatprep.subr.mxu0 0.0
    %154 = vmatpush1.msra.mxu0 0.0
    %155 = vmatprep.subr.mxu0 0.0
    %156 = vmatpush1.msra.mxu0 0.0
    %157 = vmatprep.subr.mxu0 0.0
    %158 = vmatpush1.msra.mxu0 0.0
    %159 = vmatprep.subr.mxu0 0.0
    %160 = vmatpush1.msra.mxu0 0.0
    %161 = vmatprep.subr.mxu0 0.0
    %162 = vmatpush1.msra.mxu0 0.0
    %163 = vmatprep.subr.mxu0 0.0
    %164 = vmatpush1.msra.mxu0 0.0
    %165 = vmatprep.subr.mxu0 0.0
    %166 = vmatpush1.msra.mxu0 0.0
    %167 = vmatprep.subr.mxu0 0.0
    %168 = vmatpush1.msra.mxu0 0.0
    %169 = vmatprep.subr.mxu0 0.0
    %170 = vmatpush1.msra.mxu0 0.0
    %171 = vmatprep.subr.mxu0 0.0
    %172 = vmatpush1.msra.mxu0 0.0
    %173 = vmatprep.subr.mxu0 0.0
    %174 = vmatpush1.msra.mxu0 0.0
    %175 = vmatprep.subr.mxu0 0.0
    %176 = vmatpush1.msra.mxu0 0.0
    %177 = vmatprep.subr.mxu0 0.0
    %178 = vmatpush1.msra.mxu0 0.0
    %179 = vmatprep.subr.mxu0 0.0
    %180 = vmatpush1.msra.mxu0 0.0
    %181 = vmatprep.subr.mxu0 0.0
    %182 = vmatpush1.msra.mxu0 0.0
    %183 = vmatprep.subr.mxu0 0.0
    %184 = vmatpush1.msra.mxu0 0.0
    %185 = vmatprep.subr.mxu0 0.0
    %186 = vmatpush1.msra.mxu0 0.0
    %187 = vmatprep.subr.mxu0 0.0
    %188 = vmatpush1.msra.mxu0 0.0
    %189 = vmatprep.subr.mxu0 0.0
    %190 = vmatpush1.msra.mxu0 0.0
    %191 = vmatprep.subr.mxu0 0.0
    %192 = vmatpush1.msra.mxu0 0.0
    %193 = vmatprep.subr.mxu0 0.0
    %194 = vmatpush1.msra.mxu0 0.0
    %195 = vmatprep.subr.mxu0 0.0
    %196 = vmatpush1.msra.mxu0 0.0
    %197 = vmatprep.subr.mxu0 0.0
    %198 = vmatpush1.msra.mxu0 0.0
    %199 = vmatprep.subr.mxu0 0.0
    %200 = vmatpush1.msra.mxu0 0.0
    %201 = vmatprep.mubr.f32.mxu0 0.0
    %202 = vmatmul.mubr.f32.gmra.mrb[0].mxu0 %v61
    %v203 = vpop.f32.mrb[0].mxu0
    %v204 = vadd.f32 0.0, %v203
    %v205 = vpop.f32.mrb[0].mxu0
    %206 = vdwg.mxu0
    %v207 = vrcp.pop %v204
    %v208 = vmul.f32 %v130, %v207
    %vm209 = vcmask 785408
    %210 = vst.msk [vmem:[#allocation8] sm:$0xff] %vm209, %v208
    // Predicated region
    $region26: #{tpu_custom_call.1} parent=1 // pred_check
      _
    $region27: #{tpu_custom_call.1} parent=1 // pred_check_branch
      %212 = sbr.rel (0) target = $region29
    $region28: #{tpu_custom_call.1} parent=1 // pred_region
      %s214 = ssub.s32 128, 128
      %215 = vsyncadd [#allocation4], %s214
      %s217 = sshll.u32 [#allocation8], 4
      %s218 = int_to_ptr.vmem [resolvable:$true] %s217
      %220 = dma.vmem_to_hbm [thread:$0]  %s218, 128, %s3, [#allocation4]
    $region29: #{tpu_custom_call.1} parent=1 // pred_fallthru
      _
    // Predicated region
    $region30: #{tpu_custom_call.1} parent=1 // pred_check
      _
    $region31: #{tpu_custom_call.1} parent=1 // pred_check_branch
      %222 = sbr.rel (0) target = $region33
    $region32: #{tpu_custom_call.1} parent=1 // pred_region
      %223 = dma.done [#allocation4], 128
    $region33: #{tpu_custom_call.1} parent=1 // pred_fallthru
      _
    %224 = vsyncpa [#allocation3], 1
    %225 = vsyncpa [#allocation6], 1
    %226 = vsyncpa [#allocation4], 1

</llo_original>
